<compile_context>
chip_gen: v7x
topology: tpu7x:2x2x1
jax: 0.10.0
libtpu: 0.0.40
codegen_flags: <defaults>
</compile_context>

<pallas_src>
import jax
import jax.numpy as jnp
from jax.experimental import pallas as pl
from jax.experimental.pallas import tpu as pltpu


LANE = 128


def _round_up(n, m):
    return ((n + m - 1) // m) * m


# ----------------------------- Pallas kernel ------------------------------- #
def baseline_kernel(x_ref, emb2_ref,
                    w1_ref, b1_ref,
                    w2a_ref, b2_ref,
                    wv_ref, bv_ref,
                    out_ref):
    # ---- obs branch: FC + ReLU (bf16 inputs, f32 accumulate) ----
    h1 = jnp.dot(x_ref[...], w1_ref[...],
                 preferred_element_type=jnp.float32) + b1_ref[...]      # [TB, H]
    h1 = jnp.maximum(h1, 0.0)

    # ---- merge: concat(h1, emb) @ W2 == h1 @ W2a + (emb @ W2b) ----
    # emb2_ref already holds emb @ W2b (gathered from the folded table).
    h2 = (jnp.dot(h1, w2a_ref[...], preferred_element_type=jnp.float32)
          + emb2_ref[...] + b2_ref[...])                                # [TB, H]
    h2 = jnp.maximum(h2, 0.0)

    # ---- value head (H -> 1): VPU multiply + lane reduction (skip the MXU) ----
    v = jnp.sum(h2 * wv_ref[...], axis=-1)                              # [TB]
    out_ref[...] = v[None, :] + bv_ref[...]                             # [1, TB]


# ------------------------------- wrapper ----------------------------------- #
def baseline_forward(pub_obses, range_idxs, params, *, block_b=2048):
    """pub_obses: [B, SEQ, N_FEAT] f32; range_idxs: [B] int -> baseline [B, 1] f32."""
    B, SEQ, NF = pub_obses.shape
    D = SEQ * NF
    x = pub_obses.reshape(B, D).astype(jnp.float32)
    idx = range_idxs.astype(jnp.int32)

    tab = params["emb_table"]
    w1, b1 = params["w1"], params["b1"]
    w2a, w2b, b2 = params["w2a"], params["w2b"], params["b2"]
    wv, bv = params["wv"], params["bv"]
    H = w1.shape[1]

    # Fold the embedding branch into the table and gather OUTSIDE the kernel.
    tab2 = jnp.dot(tab, w2b)                                  # [R, H] f32
    emb2 = jnp.take(tab2, idx, axis=0)                        # [B, H] f32

    # bf16 on the dominant HBM stream / first matmul (f32 accumulation in kernel).
    x = x.astype(jnp.bfloat16)
    w1 = w1.astype(jnp.bfloat16)

    # Batch tiling: lane-multiple tiles so the (1, TB) output row is a dense vst.
    B_lane = _round_up(B, LANE)
    TB = min(_round_up(block_b, LANE), B_lane)
    # v7x: keep >= 2 grid steps so both TensorCores get work (no-op on v5e/v6e).
    if B_lane // TB < 2 and B_lane >= 2 * LANE:
        TB = _round_up((B_lane + 1) // 2, LANE)
    Bp = _round_up(B, TB)
    grid = (Bp // TB,)

    if Bp != B:
        x = jnp.pad(x, ((0, Bp - B), (0, 0)))
        emb2 = jnp.pad(emb2, ((0, Bp - B), (0, 0)))

    def const_spec(arr):
        return pl.BlockSpec(arr.shape, lambda i: (0, 0))

    flops = 2 * Bp * (D * H + H * H + H)
    bytes_accessed = (2 * (x.size + w1.size)                  # bf16 streams
                      + 4 * (emb2.size + b1.size + w2a.size + b2.size
                             + wv.size + bv.size + Bp))

    out = pl.pallas_call(
        baseline_kernel,
        out_shape=jax.ShapeDtypeStruct((1, Bp), jnp.float32),
        grid=grid,
        in_specs=[
            pl.BlockSpec((TB, D), lambda i: (i, 0)),   # x     (blocked on batch)
            pl.BlockSpec((TB, H), lambda i: (i, 0)),   # emb@W2b (blocked on batch)
            const_spec(w1), const_spec(b1),            # resident weights
            const_spec(w2a), const_spec(b2),
            const_spec(wv), const_spec(bv),
        ],
        out_specs=pl.BlockSpec((1, TB), lambda i: (0, i)),     # lane-dense row
        compiler_params=pltpu.CompilerParams(
            dimension_semantics=("parallel",),
            vmem_limit_bytes=32 * 1024 * 1024),
        cost_estimate=pl.CostEstimate(
            flops=flops, transcendentals=0, bytes_accessed=bytes_accessed),
    )(x, emb2, w1, b1, w2a, b2, wv, bv)

    return out[0, :B].reshape(B, 1)


# --------------------------- deterministic params --------------------------- #
def init_params(key, d_obs, emb_dim, hidden, n_ranges):
    ks = jax.random.split(key, 8)

    def lin(k, fan_in, shape):
        bound = 1.0 / jnp.sqrt(jnp.float32(fan_in))
        return jax.random.uniform(k, shape, jnp.float32, -bound, bound)

    # NOTE: w2a/w2b row split matches PyTorch's concat order (h_obs first, emb second).
    return {
        "emb_table": jax.random.normal(ks[0], (n_ranges, emb_dim), jnp.float32) * 0.1,
        "w1":  lin(ks[1], d_obs, (d_obs, hidden)),
        "b1":  lin(ks[2], d_obs, (1, hidden)),
        "w2a": lin(ks[3], hidden + emb_dim, (hidden, hidden)),
        "w2b": lin(ks[4], hidden + emb_dim, (emb_dim, hidden)),
        "b2":  lin(ks[5], hidden + emb_dim, (1, hidden)),
        "wv":  lin(ks[6], hidden, (1, hidden)),   # PyTorch Linear(H,1) weight layout
        "bv":  lin(ks[7], hidden, (1, 1)),
    }


if __name__ == "__main__":
    key = jax.random.PRNGKey(0)
    k_obs, k_idx, k_par = jax.random.split(key, 3)

    B, SEQ, NF = 4, 8, 24          # batch, history_len, n_features
    HIDDEN = 32                    # MPM output_units
    EMB = 16                       # range embedding dim
    N_RANGES = 1326                # 52 choose 2 hole-card combos

    pub_obses = jax.random.normal(k_obs, (B, SEQ, NF), jnp.float32)
    range_idxs = jax.random.randint(k_idx, (B,), 0, N_RANGES, jnp.int32)

    params = init_params(k_par, SEQ * NF, EMB, HIDDEN, N_RANGES)

    baseline = baseline_forward(pub_obses, range_idxs, params)
    jax.block_until_ready(baseline)
    assert baseline.shape == (B, 1) and baseline.dtype == jnp.float32
    assert bool(jnp.all(jnp.isfinite(baseline)))
    print("KERNEL_OK")
</pallas_src>

<mosaic_0001>
module attributes {stable_mosaic.version = 11 : i64} {
  func.func @baseline_kernel(%arg0: i32, %arg1: memref<128x192xbf16, #tpu.memory_space<vmem>>, %arg2: memref<128x32xf32, #tpu.memory_space<vmem>>, %arg3: memref<192x32xbf16, #tpu.memory_space<vmem>>, %arg4: memref<1x32xf32, #tpu.memory_space<vmem>>, %arg5: memref<32x32xf32, #tpu.memory_space<vmem>>, %arg6: memref<1x32xf32, #tpu.memory_space<vmem>>, %arg7: memref<1x32xf32, #tpu.memory_space<vmem>>, %arg8: memref<1x1xf32, #tpu.memory_space<vmem>>, %arg9: memref<1x128xf32, #tpu.memory_space<vmem>>) attributes {dimension_semantics = [#tpu.dimension_semantics<parallel>], iteration_bounds = array<i64: 1>, scalar_prefetch = 0 : i64, scratch_operands = 0 : i64, tpu.core_type = #tpu.core_type<tc>, window_params = [{transform_indices = @transform_0, window_bounds = array<i64: 128, 192>}, {transform_indices = @transform_1, window_bounds = array<i64: 128, 32>}, {pipeline_mode = #tpu.pipeline_mode<synchronous>, transform_indices = @transform_2, window_bounds = array<i64: 192, 32>}, {pipeline_mode = #tpu.pipeline_mode<synchronous>, transform_indices = @transform_3, window_bounds = array<i64: 1, 32>}, {pipeline_mode = #tpu.pipeline_mode<synchronous>, transform_indices = @transform_4, window_bounds = array<i64: 32, 32>}, {pipeline_mode = #tpu.pipeline_mode<synchronous>, transform_indices = @transform_5, window_bounds = array<i64: 1, 32>}, {pipeline_mode = #tpu.pipeline_mode<synchronous>, transform_indices = @transform_6, window_bounds = array<i64: 1, 32>}, {pipeline_mode = #tpu.pipeline_mode<synchronous>, transform_indices = @transform_7, window_bounds = array<i64: 1, 1>}, {transform_indices = @transform_8, window_bounds = array<i64: 1, 128>}]} {
    %c0 = arith.constant 0 : index
    %c0_0 = arith.constant 0 : index
    %0 = vector.load %arg1[%c0, %c0_0] : memref<128x192xbf16, #tpu.memory_space<vmem>>, vector<128x192xbf16>
    %c0_1 = arith.constant 0 : index
    %c0_2 = arith.constant 0 : index
    %1 = vector.load %arg3[%c0_1, %c0_2] : memref<192x32xbf16, #tpu.memory_space<vmem>>, vector<192x32xbf16>
    %cst = arith.constant dense<0.000000e+00> : vector<128x32xf32>
    %2 = tpu.matmul %0, %1, %cst {dimension_numbers = #tpu.dot_dimension_numbers<[1], [0], [0], [1], [0, 0, 1, 1], [], []>} : vector<128x192xbf16>, vector<192x32xbf16>, vector<128x32xf32> -> vector<128x32xf32>
    %c0_3 = arith.constant 0 : index
    %c0_4 = arith.constant 0 : index
    %3 = vector.load %arg4[%c0_3, %c0_4] : memref<1x32xf32, #tpu.memory_space<vmem>>, vector<1x32xf32>
    %4 = vector.broadcast %3 : vector<1x32xf32> to vector<128x32xf32>
    %5 = arith.addf %2, %4 : vector<128x32xf32>
    %cst_5 = arith.constant 0.000000e+00 : f32
    %6 = vector.broadcast %cst_5 : f32 to vector<128x32xf32>
    %7 = arith.maximumf %5, %6 : vector<128x32xf32>
    %c0_6 = arith.constant 0 : index
    %c0_7 = arith.constant 0 : index
    %8 = vector.load %arg5[%c0_6, %c0_7] : memref<32x32xf32, #tpu.memory_space<vmem>>, vector<32x32xf32>
    %cst_8 = arith.constant dense<0.000000e+00> : vector<128x32xf32>
    %9 = tpu.matmul %7, %8, %cst_8 {dimension_numbers = #tpu.dot_dimension_numbers<[1], [0], [0], [1], [0, 0, 1, 1], [], []>} : vector<128x32xf32>, vector<32x32xf32>, vector<128x32xf32> -> vector<128x32xf32>
    %c0_9 = arith.constant 0 : index
    %c0_10 = arith.constant 0 : index
    %10 = vector.load %arg2[%c0_9, %c0_10] : memref<128x32xf32, #tpu.memory_space<vmem>>, vector<128x32xf32>
    %11 = arith.addf %9, %10 : vector<128x32xf32>
    %c0_11 = arith.constant 0 : index
    %c0_12 = arith.constant 0 : index
    %12 = vector.load %arg6[%c0_11, %c0_12] : memref<1x32xf32, #tpu.memory_space<vmem>>, vector<1x32xf32>
    %13 = vector.broadcast %12 : vector<1x32xf32> to vector<128x32xf32>
    %14 = arith.addf %11, %13 : vector<128x32xf32>
    %cst_13 = arith.constant 0.000000e+00 : f32
    %15 = vector.broadcast %cst_13 : f32 to vector<128x32xf32>
    %16 = arith.maximumf %14, %15 : vector<128x32xf32>
    %c0_14 = arith.constant 0 : index
    %c0_15 = arith.constant 0 : index
    %17 = vector.load %arg7[%c0_14, %c0_15] : memref<1x32xf32, #tpu.memory_space<vmem>>, vector<1x32xf32>
    %18 = vector.broadcast %17 : vector<1x32xf32> to vector<128x32xf32>
    %19 = arith.mulf %16, %18 : vector<128x32xf32>
    %cst_16 = arith.constant dense<0.000000e+00> : vector<128xf32>
    %20 = vector.multi_reduction <add>, %19, %cst_16 [1] : vector<128x32xf32> to vector<128xf32>
    %21 = vector.shape_cast %20 : vector<128xf32> to vector<1x128xf32>
    %c0_17 = arith.constant 0 : index
    %c0_18 = arith.constant 0 : index
    %22 = vector.load %arg8[%c0_17, %c0_18] : memref<1x1xf32, #tpu.memory_space<vmem>>, vector<1x1xf32>
    %23 = vector.broadcast %22 : vector<1x1xf32> to vector<1x128xf32>
    %24 = arith.addf %21, %23 : vector<1x128xf32>
    %c0_19 = arith.constant 0 : index
    %c0_20 = arith.constant 0 : index
    %25 = vector.load %arg9[%c0_19, %c0_20] : memref<1x128xf32, #tpu.memory_space<vmem>>, vector<1x128xf32>
    tpu.vector_store %arg9[%c0_19, %c0_20], %24 {strides = array<i32>} : memref<1x128xf32, #tpu.memory_space<vmem>>, vector<1x128xf32>,
    return
  }
  func.func @transform_0(%arg0: i32) -> (i32, i32) {
    %c0_i32 = arith.constant 0 : i32
    %c0_i32_0 = arith.constant 0 : i32
    return %arg0, %c0_i32 : i32, i32
  }
  func.func @transform_1(%arg0: i32) -> (i32, i32) {
    %c0_i32 = arith.constant 0 : i32
    %c0_i32_0 = arith.constant 0 : i32
    return %arg0, %c0_i32 : i32, i32
  }
  func.func @transform_2(%arg0: i32) -> (i32, i32) {
    %c0_i32 = arith.constant 0 : i32
    %c0_i32_0 = arith.constant 0 : i32
    %c0_i32_1 = arith.constant 0 : i32
    return %c0_i32, %c0_i32_0 : i32, i32
  }
  func.func @transform_3(%arg0: i32) -> (i32, i32) {
    %c0_i32 = arith.constant 0 : i32
    %c0_i32_0 = arith.constant 0 : i32
    %c0_i32_1 = arith.constant 0 : i32
    return %c0_i32, %c0_i32_0 : i32, i32
  }
  func.func @transform_4(%arg0: i32) -> (i32, i32) {
    %c0_i32 = arith.constant 0 : i32
    %c0_i32_0 = arith.constant 0 : i32
    %c0_i32_1 = arith.constant 0 : i32
    return %c0_i32, %c0_i32_0 : i32, i32
  }
  func.func @transform_5(%arg0: i32) -> (i32, i32) {
    %c0_i32 = arith.constant 0 : i32
    %c0_i32_0 = arith.constant 0 : i32
    %c0_i32_1 = arith.constant 0 : i32
    return %c0_i32, %c0_i32_0 : i32, i32
  }
  func.func @transform_6(%arg0: i32) -> (i32, i32) {
    %c0_i32 = arith.constant 0 : i32
    %c0_i32_0 = arith.constant 0 : i32
    %c0_i32_1 = arith.constant 0 : i32
    return %c0_i32, %c0_i32_0 : i32, i32
  }
  func.func @transform_7(%arg0: i32) -> (i32, i32) {
    %c0_i32 = arith.constant 0 : i32
    %c0_i32_0 = arith.constant 0 : i32
    %c0_i32_1 = arith.constant 0 : i32
    return %c0_i32, %c0_i32_0 : i32, i32
  }
  func.func @transform_8(%arg0: i32) -> (i32, i32) {
    %c0_i32 = arith.constant 0 : i32
    %c0_i32_0 = arith.constant 0 : i32
    return %c0_i32, %arg0 : i32, i32
  }
}

</mosaic_0001>

<llo_original>
// kernel: tpu_custom_call.1
$region0: #{tpu_custom_call.1}
  #allocation0 [shape = 'u32[]', space=smem, size = 0x4, offset = 0x4, fixed_abs, tag = 'smem constant byte address 0x4 - core index']
  #allocation1 [shape = 'u32[144,128]{1,0:T(1,128)}', space=vmem, size = 0x12000, scoped, tag = 'internal scratch']
  #allocation2 [shape = 'f32[1,1]{1,0:T(1,128)S(1)}', space=vmem, size = 0x200, scoped, tag = 'scoped memory for tpu_custom_call.1']
  %s0 = inlined_call_operand.vmem [shape: bf16[128,192], index: 0, kind: input, shape index: {}]
  %s1 = inlined_call_operand.vmem [shape: f32[128,32], index: 1, kind: input, shape index: {}]
  %s2 = inlined_call_operand.vmem [shape: bf16[192,32], index: 2, kind: input, shape index: {}]
  %s3 = inlined_call_operand.vmem [shape: f32[1,32], index: 3, kind: input, shape index: {}]
  %s4 = inlined_call_operand.vmem [shape: f32[32,32], index: 4, kind: input, shape index: {}]
  %s5 = inlined_call_operand.vmem [shape: f32[1,32], index: 5, kind: input, shape index: {}]
  %s6 = inlined_call_operand.vmem [shape: f32[1,32], index: 6, kind: input, shape index: {}]
  %s7 = inlined_call_operand.<no memory space> [shape: f32[1,1], index: 7, kind: input, shape index: {}]
  %s8 = inlined_call_operand.hbm [shape: f32[1,128], index: 8, kind: output, shape index: {}]
  %s9 = sld [smem:[#allocation0]]
  $region42: #{tpu_custom_call.1} parent=0
    _
  %s11 = ssub.s32 1, %s9
  %s12 = scalar_select 0, %s11, %s9
  %v13 = vstv %s7
  %14 = vst [vmem:[#allocation2] sm:$0x1] %v13
  $region1: #{tpu_custom_call.1} parent=0
    #allocation3 [shape = 'u8[512]{0}', space=vmem, size = 0x400, scoped, tag = 'output window, operand 0, single buffered']
    #allocation4 [shape = 's32[1]{0}', space=sflag, size = 0x4, scoped, tag = 'scoped memory for tpu_custom_call.1']
    %15 = vsyncpa [#allocation4], 0
    // Predicated region
    $region2: #{tpu_custom_call.1} parent=1 // pred_check
      _
    $region3: #{tpu_custom_call.1} parent=1 // pred_check_branch
      %17 = sbr.rel (0) target = $region5
    $region4: #{tpu_custom_call.1} parent=1 // pred_region
      _
    $region5: #{tpu_custom_call.1} parent=1 // pred_fallthru
      _
    // Predicated region
    $region6: #{tpu_custom_call.1} parent=1 // pred_check
      _
    $region7: #{tpu_custom_call.1} parent=1 // pred_check_branch
      %19 = sbr.rel (0) target = $region9
    $region8: #{tpu_custom_call.1} parent=1 // pred_region
      _
    $region9: #{tpu_custom_call.1} parent=1 // pred_fallthru
      _
    // Predicated region
    $region10: #{tpu_custom_call.1} parent=1 // pred_check
      _
    $region11: #{tpu_custom_call.1} parent=1 // pred_check_branch
      %21 = sbr.rel (0) target = $region13
    $region12: #{tpu_custom_call.1} parent=1 // pred_region
      _
    $region13: #{tpu_custom_call.1} parent=1 // pred_fallthru
      _
    // Predicated region
    $region14: #{tpu_custom_call.1} parent=1 // pred_check
      _
    $region15: #{tpu_custom_call.1} parent=1 // pred_check_branch
      %23 = sbr.rel (0) target = $region17
    $region16: #{tpu_custom_call.1} parent=1 // pred_region
      _
    $region17: #{tpu_custom_call.1} parent=1 // pred_fallthru
      _
    // Predicated region
    $region18: #{tpu_custom_call.1} parent=1 // pred_check
      _
    $region19: #{tpu_custom_call.1} parent=1 // pred_check_branch
      %25 = sbr.rel (0) target = $region21
    $region20: #{tpu_custom_call.1} parent=1 // pred_region
      _
    $region21: #{tpu_custom_call.1} parent=1 // pred_fallthru
      _
    // Predicated region
    $region22: #{tpu_custom_call.1} parent=1 // pred_check
      _
    $region23: #{tpu_custom_call.1} parent=1 // pred_check_branch
      %27 = sbr.rel (0) target = $region25
    $region24: #{tpu_custom_call.1} parent=1 // pred_region
      _
    $region25: #{tpu_custom_call.1} parent=1 // pred_fallthru
      _
    // Predicated region
    $region26: #{tpu_custom_call.1} parent=1 // pred_check
      _
    $region27: #{tpu_custom_call.1} parent=1 // pred_check_branch
      %29 = sbr.rel (0) target = $region29
    $region28: #{tpu_custom_call.1} parent=1 // pred_region
      _
    $region29: #{tpu_custom_call.1} parent=1 // pred_fallthru
      _
    // Predicated region
    $region30: #{tpu_custom_call.1} parent=1 // pred_check
      _
    $region31: #{tpu_custom_call.1} parent=1 // pred_check_branch
      %31 = sbr.rel (0) target = $region33
    $region32: #{tpu_custom_call.1} parent=1 // pred_region
      _
    $region33: #{tpu_custom_call.1} parent=1 // pred_fallthru
      _
    %v33 = vld [vmem:[%s0] sm:$0xff]
    %v34 = vld [vmem:[%s0 + $0x8] sm:$0xff]
    %v35 = vld [vmem:[%s0 + $0x10] sm:$0xff]
    %v36 = vld [vmem:[%s0 + $0x18] sm:$0xff]
    %v37 = vld [vmem:[%s0 + $0x20] sm:$0xff]
    %v38 = vld [vmem:[%s0 + $0x28] sm:$0xff]
    %v39 = vld [vmem:[%s0 + $0x30] sm:$0xff]
    %v40 = vld [vmem:[%s0 + $0x38] sm:$0xff]
    %v41 = vld [vmem:[%s0 + $0x40] sm:$0xff]
    %v42 = vld [vmem:[%s0 + $0x48] sm:$0xff]
    %v43 = vld [vmem:[%s0 + $0x50] sm:$0xff]
    %v44 = vld [vmem:[%s0 + $0x58] sm:$0xff]
    %v45 = vld [vmem:[%s0 + $0x60] sm:$0xff]
    %v46 = vld [vmem:[%s0 + $0x68] sm:$0xff]
    %v47 = vld [vmem:[%s0 + $0x70] sm:$0xff]
    %v48 = vld [vmem:[%s0 + $0x78] sm:$0xff]
    %v49 = vld [vmem:[%s2] sm:$0xf]
    %v50 = vld [vmem:[%s2 + $0x4] sm:$0xf]
    %v51 = vld [vmem:[%s2 + $0x8] sm:$0xf]
    %v52 = vld [vmem:[%s2 + $0xc] sm:$0xf]
    %v53 = vld [vmem:[%s2 + $0x10] sm:$0xf]
    %v54 = vld [vmem:[%s2 + $0x14] sm:$0xf]
    %v55 = vld [vmem:[%s2 + $0x18] sm:$0xf]
    %v56 = vld [vmem:[%s2 + $0x1c] sm:$0xf]
    %v57 = vld [vmem:[%s2 + $0x20] sm:$0xf]
    %v58 = vld [vmem:[%s2 + $0x24] sm:$0xf]
    %v59 = vld [vmem:[%s2 + $0x28] sm:$0xf]
    %v60 = vld [vmem:[%s2 + $0x2c] sm:$0xf]
    %v61 = vld [vmem:[%s2 + $0x30] sm:$0xf]
    %v62 = vld [vmem:[%s2 + $0x34] sm:$0xf]
    %v63 = vld [vmem:[%s2 + $0x38] sm:$0xf]
    %v64 = vld [vmem:[%s2 + $0x3c] sm:$0xf]
    %v65 = vld [vmem:[%s2 + $0x40] sm:$0xf]
    %v66 = vld [vmem:[%s2 + $0x44] sm:$0xf]
    %v67 = vld [vmem:[%s2 + $0x48] sm:$0xf]
    %v68 = vld [vmem:[%s2 + $0x4c] sm:$0xf]
    %v69 = vld [vmem:[%s2 + $0x50] sm:$0xf]
    %v70 = vld [vmem:[%s2 + $0x54] sm:$0xf]
    %v71 = vld [vmem:[%s2 + $0x58] sm:$0xf]
    %v72 = vld [vmem:[%s2 + $0x5c] sm:$0xf]
    %v73 = vld [vmem:[%s3] sm:$0x1]
    %v75 = vlaneseq
    %v76 = vshrl.u32 %v75, 7
    %v77 = vsub.s32 0, %v76
    %v78 = vrot.slane %v73, %v77
    %v96 = vunpack.c.l.b16 %v33
    %v97 = vunpack.c.h.b16 %v33
    %v98 = vunpack.c.l.b16 %v34
    %v99 = vunpack.c.h.b16 %v34
    %v100 = vunpack.c.l.b16 %v35
    %v101 = vunpack.c.h.b16 %v35
    %v102 = vunpack.c.l.b16 %v36
    %v103 = vunpack.c.h.b16 %v36
    %v104 = vunpack.c.l.b16 %v37
    %v105 = vunpack.c.h.b16 %v37
    %v106 = vunpack.c.l.b16 %v38
    %v107 = vunpack.c.h.b16 %v38
    %v108 = vunpack.c.l.b16 %v39
    %v109 = vunpack.c.h.b16 %v39
    %v110 = vunpack.c.l.b16 %v40
    %v111 = vunpack.c.h.b16 %v40
    %v112 = vunpack.c.l.b16 %v41
    %v113 = vunpack.c.h.b16 %v41
    %v114 = vunpack.c.l.b16 %v42
    %v115 = vunpack.c.h.b16 %v42
    %v116 = vunpack.c.l.b16 %v43
    %v117 = vunpack.c.h.b16 %v43
    %v118 = vunpack.c.l.b16 %v44
    %v119 = vunpack.c.h.b16 %v44
    %v120 = vunpack.c.l.b16 %v45
    %v121 = vunpack.c.h.b16 %v45
    %v122 = vunpack.c.l.b16 %v46
    %v123 = vunpack.c.h.b16 %v46
    %v124 = vunpack.c.l.b16 %v47
    %v125 = vunpack.c.h.b16 %v47
    %v126 = vunpack.c.l.b16 %v48
    %v127 = vunpack.c.h.b16 %v48
    %v128 = vpack.c.b16 %v98, %v96
    %v129 = vpack.c.b16 %v99, %v97
    %v130 = vpack.c.b16 %v102, %v100
    %v131 = vpack.c.b16 %v103, %v101
    %v132 = vpack.c.b16 %v106, %v104
    %v133 = vpack.c.b16 %v107, %v105
    %v134 = vpack.c.b16 %v110, %v108
    %v135 = vpack.c.b16 %v111, %v109
    %v136 = vpack.c.b16 %v114, %v112
    %v137 = vpack.c.b16 %v115, %v113
    %v138 = vpack.c.b16 %v118, %v116
    %v139 = vpack.c.b16 %v119, %v117
    %v140 = vpack.c.b16 %v122, %v120
    %v141 = vpack.c.b16 %v123, %v121
    %v142 = vpack.c.b16 %v126, %v124
    %v143 = vpack.c.b16 %v127, %v125
    %v176 = vunpack.c.l.b16 %v49
    %v177 = vunpack.c.l.b16 %v50
    %v178 = vunpack.c.l.b16 %v51
    %v179 = vunpack.c.l.b16 %v52
    %v180 = vunpack.c.l.b16 %v53
    %v181 = vunpack.c.l.b16 %v54
    %v182 = vunpack.c.l.b16 %v55
    %v183 = vunpack.c.l.b16 %v56
    %v184 = vunpack.c.l.b16 %v57
    %v185 = vunpack.c.l.b16 %v58
    %v186 = vunpack.c.l.b16 %v59
    %v187 = vunpack.c.l.b16 %v60
    %v188 = vunpack.c.l.b16 %v61
    %v189 = vunpack.c.l.b16 %v62
    %v190 = vunpack.c.l.b16 %v63
    %v191 = vunpack.c.l.b16 %v64
    %v192 = vunpack.c.l.b16 %v65
    %v193 = vunpack.c.l.b16 %v66
    %v194 = vunpack.c.l.b16 %v67
    %v195 = vunpack.c.l.b16 %v68
    %v196 = vunpack.c.l.b16 %v69
    %v197 = vunpack.c.l.b16 %v70
    %v198 = vunpack.c.l.b16 %v71
    %v199 = vunpack.c.l.b16 %v72
    %v200 = vpack.c.b16 %v177, %v176
    %v201 = vpack.c.b16 %v179, %v178
    %v202 = vpack.c.b16 %v181, %v180
    %v203 = vpack.c.b16 %v183, %v182
    %v204 = vpack.c.b16 %v185, %v184
    %v205 = vpack.c.b16 %v187, %v186
    %v206 = vpack.c.b16 %v189, %v188
    %v207 = vpack.c.b16 %v191, %v190
    %v208 = vpack.c.b16 %v193, %v192
    %v209 = vpack.c.b16 %v195, %v194
    %v210 = vpack.c.b16 %v197, %v196
    %v211 = vpack.c.b16 %v199, %v198
    %vm224 = vcmask 523264
    %v226 = vsel %vm224, %v129, 0
    %v229 = vsel %vm224, %v131, 0
    %v232 = vsel %vm224, %v133, 0
    %v235 = vsel %vm224, %v135, 0
    %v238 = vsel %vm224, %v137, 0
    %v241 = vsel %vm224, %v139, 0
    %v244 = vsel %vm224, %v141, 0
    %v247 = vsel %vm224, %v143, 0
    %249 = vmatprep.subr.bf16.mxu0 0
    %250 = vmatpush1.bf16.msra.mxu0 %v200
    %251 = vmatprep.subr.bf16.mxu0 0
    %252 = vmatpush1.bf16.msra.mxu0 %v201
    %253 = vmatprep.subr.bf16.mxu0 0
    %254 = vmatpush1.bf16.msra.mxu0 %v202
    %255 = vmatprep.subr.bf16.mxu0 0
    %256 = vmatpush1.bf16.msra.mxu0 %v203
    %257 = vmatprep.subr.bf16.mxu0 0
    %258 = vmatpush1.bf16.msra.mxu0 %v204
    %259 = vmatprep.subr.bf16.mxu0 0
    %260 = vmatpush1.bf16.msra.mxu0 %v205
    %261 = vmatprep.subr.bf16.mxu0 0
    %262 = vmatpush1.bf16.msra.mxu0 %v206
    %263 = vmatprep.subr.bf16.mxu0 0
    %264 = vmatpush1.bf16.msra.mxu0 %v207
    %265 = vmatprep.subr.bf16.mxu0 0
    %266 = vmatpush1.bf16.msra.mxu0 %v208
    %267 = vmatprep.subr.bf16.mxu0 0
    %268 = vmatpush1.bf16.msra.mxu0 %v209
    %269 = vmatprep.subr.bf16.mxu0 0
    %270 = vmatpush1.bf16.msra.mxu0 %v210
    %271 = vmatprep.subr.bf16.mxu0 0
    %272 = vmatpush1.bf16.msra.mxu0 %v211
    %273 = vmatprep.subr.bf16.mxu0 0
    %274 = vmatpush1.bf16.msra.mxu0 0
    %275 = vmatprep.subr.bf16.mxu0 0
    %276 = vmatpush1.bf16.msra.mxu0 0
    %277 = vmatprep.subr.bf16.mxu0 0
    %278 = vmatpush1.bf16.msra.mxu0 0
    %279 = vmatprep.subr.bf16.mxu0 0
    %280 = vmatpush1.bf16.msra.mxu0 0
    %281 = vmatprep.mubr.bf16.mxu0 %v226
    %282 = vmatmul.mubr.bf16.gmra.mrb[0].mxu0 %v128
    %v283 = vpop.f32.mrb[0].mxu0
    %v284 = vadd.f32 %v78, %v283
    %v285 = vpop.f32.mrb[0].mxu0
    %v286 = vpop.f32.mrb[0].mxu0
    %v287 = vadd.f32 %v78, %v286
    %v288 = vpop.f32.mrb[0].mxu0
    %289 = vmatprep.mubr.bf16.mxu0 %v229
    %290 = vmatmul.mubr.bf16.gmra.mrb[0].mxu0 %v130
    %v291 = vpop.f32.mrb[0].mxu0
    %v292 = vadd.f32 %v78, %v291
    %v293 = vpop.f32.mrb[0].mxu0
    %v294 = vpop.f32.mrb[0].mxu0
    %v295 = vadd.f32 %v78, %v294
    %v296 = vpop.f32.mrb[0].mxu0
    %297 = vmatprep.mubr.bf16.mxu0 %v232
    %298 = vmatmul.mubr.bf16.gmra.mrb[0].mxu0 %v132
    %v299 = vpop.f32.mrb[0].mxu0
    %v300 = vadd.f32 %v78, %v299
    %v301 = vpop.f32.mrb[0].mxu0
    %v302 = vpop.f32.mrb[0].mxu0
    %v303 = vadd.f32 %v78, %v302
    %v304 = vpop.f32.mrb[0].mxu0
    %305 = vmatprep.mubr.bf16.mxu0 %v235
    %306 = vmatmul.mubr.bf16.gmra.mrb[0].mxu0 %v134
    %v307 = vpop.f32.mrb[0].mxu0
    %v308 = vadd.f32 %v78, %v307
    %v309 = vpop.f32.mrb[0].mxu0
    %v310 = vpop.f32.mrb[0].mxu0
    %v311 = vadd.f32 %v78, %v310
    %v312 = vpop.f32.mrb[0].mxu0
    %313 = vmatprep.mubr.bf16.mxu0 %v238
    %314 = vmatmul.mubr.bf16.gmra.mrb[0].mxu0 %v136
    %v315 = vpop.f32.mrb[0].mxu0
    %v316 = vadd.f32 %v78, %v315
    %v317 = vpop.f32.mrb[0].mxu0
    %v318 = vpop.f32.mrb[0].mxu0
    %v319 = vadd.f32 %v78, %v318
    %v320 = vpop.f32.mrb[0].mxu0
    %321 = vmatprep.mubr.bf16.mxu0 %v241
    %322 = vmatmul.mubr.bf16.gmra.mrb[0].mxu0 %v138
    %v323 = vpop.f32.mrb[0].mxu0
    %v324 = vadd.f32 %v78, %v323
    %v325 = vpop.f32.mrb[0].mxu0
    %v326 = vpop.f32.mrb[0].mxu0
    %v327 = vadd.f32 %v78, %v326
    %v328 = vpop.f32.mrb[0].mxu0
    %329 = vmatprep.mubr.bf16.mxu0 %v244
    %330 = vmatmul.mubr.bf16.gmra.mrb[0].mxu0 %v140
    %v331 = vpop.f32.mrb[0].mxu0
    %v332 = vadd.f32 %v78, %v331
    %v333 = vpop.f32.mrb[0].mxu0
    %v334 = vpop.f32.mrb[0].mxu0
    %v335 = vadd.f32 %v78, %v334
    %v336 = vpop.f32.mrb[0].mxu0
    %337 = vmatprep.mubr.bf16.mxu0 %v247
    %338 = vmatmul.mubr.bf16.gmra.mrb[0].mxu0 %v142
    %v339 = vpop.f32.mrb[0].mxu0
    %v340 = vadd.f32 %v78, %v339
    %v341 = vpop.f32.mrb[0].mxu0
    %v342 = vpop.f32.mrb[0].mxu0
    %v343 = vadd.f32 %v78, %v342
    %v344 = vpop.f32.mrb[0].mxu0
    %345 = vdwg.mxu0
    %v346 = vmax.f32 %v284, 0.0
    %v347 = vmax.f32 %v287, 0.0
    %v348 = vmax.f32 %v292, 0.0
    %v349 = vmax.f32 %v295, 0.0
    %v350 = vmax.f32 %v300, 0.0
    %v351 = vmax.f32 %v303, 0.0
    %v352 = vmax.f32 %v308, 0.0
    %v353 = vmax.f32 %v311, 0.0
    %v354 = vmax.f32 %v316, 0.0
    %v355 = vmax.f32 %v319, 0.0
    %v356 = vmax.f32 %v324, 0.0
    %v357 = vmax.f32 %v327, 0.0
    %v358 = vmax.f32 %v332, 0.0
    %v359 = vmax.f32 %v335, 0.0
    %v360 = vmax.f32 %v340, 0.0
    %v361 = vmax.f32 %v343, 0.0
    %v362 = vld [vmem:[%s4] sm:$0xff]
    %v363 = vld [vmem:[%s4 + $0x8] sm:$0xff]
    %v364 = vld [vmem:[%s4 + $0x10] sm:$0xff]
    %v365 = vld [vmem:[%s4 + $0x18] sm:$0xff]
    %v366 = vld [vmem:[%s1] sm:$0xff]
    %v367 = vld [vmem:[%s1 + $0x8] sm:$0xff]
    %v368 = vld [vmem:[%s1 + $0x10] sm:$0xff]
    %v369 = vld [vmem:[%s1 + $0x18] sm:$0xff]
    %v370 = vld [vmem:[%s1 + $0x20] sm:$0xff]
    %v371 = vld [vmem:[%s1 + $0x28] sm:$0xff]
    %v372 = vld [vmem:[%s1 + $0x30] sm:$0xff]
    %v373 = vld [vmem:[%s1 + $0x38] sm:$0xff]
    %v374 = vld [vmem:[%s1 + $0x40] sm:$0xff]
    %v375 = vld [vmem:[%s1 + $0x48] sm:$0xff]
    %v376 = vld [vmem:[%s1 + $0x50] sm:$0xff]
    %v377 = vld [vmem:[%s1 + $0x58] sm:$0xff]
    %v378 = vld [vmem:[%s1 + $0x60] sm:$0xff]
    %v379 = vld [vmem:[%s1 + $0x68] sm:$0xff]
    %v380 = vld [vmem:[%s1 + $0x70] sm:$0xff]
    %v381 = vld [vmem:[%s1 + $0x78] sm:$0xff]
    %vm382 = vcmask 261120
    %v384 = vsel %vm382, %v346, 0
    %v387 = vsel %vm382, %v347, 0
    %v390 = vsel %vm382, %v348, 0
    %v393 = vsel %vm382, %v349, 0
    %v396 = vsel %vm382, %v350, 0
    %v399 = vsel %vm382, %v351, 0
    %v402 = vsel %vm382, %v352, 0
    %v405 = vsel %vm382, %v353, 0
    %v408 = vsel %vm382, %v354, 0
    %v411 = vsel %vm382, %v355, 0
    %v414 = vsel %vm382, %v356, 0
    %v417 = vsel %vm382, %v357, 0
    %v420 = vsel %vm382, %v358, 0
    %v423 = vsel %vm382, %v359, 0
    %v426 = vsel %vm382, %v360, 0
    %v429 = vsel %vm382, %v361, 0
    %431 = vmatprep.subr.mxu0 0.0
    %432 = vmatpush1.msra.mxu0 %v362
    %433 = vmatprep.subr.mxu0 0.0
    %434 = vmatpush1.msra.mxu0 %v363
    %435 = vmatprep.subr.mxu0 0.0
    %436 = vmatpush1.msra.mxu0 %v364
    %437 = vmatprep.subr.mxu0 0.0
    %438 = vmatpush1.msra.mxu0 %v365
    %439 = vmatprep.subr.mxu0 0.0
    %440 = vmatpush1.msra.mxu0 0.0
    %441 = vmatprep.subr.mxu0 0.0
    %442 = vmatpush1.msra.mxu0 0.0
    %443 = vmatprep.subr.mxu0 0.0
    %444 = vmatpush1.msra.mxu0 0.0
    %445 = vmatprep.subr.mxu0 0.0
    %446 = vmatpush1.msra.mxu0 0.0
    %447 = vmatprep.subr.mxu0 0.0
    %448 = vmatpush1.msra.mxu0 0.0
    %449 = vmatprep.subr.mxu0 0.0
    %450 = vmatpush1.msra.mxu0 0.0
    %451 = vmatprep.subr.mxu0 0.0
    %452 = vmatpush1.msra.mxu0 0.0
    %453 = vmatprep.subr.mxu0 0.0
    %454 = vmatpush1.msra.mxu0 0.0
    %455 = vmatprep.subr.mxu0 0.0
    %456 = vmatpush1.msra.mxu0 0.0
    %457 = vmatprep.subr.mxu0 0.0
    %458 = vmatpush1.msra.mxu0 0.0
    %459 = vmatprep.subr.mxu0 0.0
    %460 = vmatpush1.msra.mxu0 0.0
    %461 = vmatprep.subr.mxu0 0.0
    %462 = vmatpush1.msra.mxu0 0.0
    %463 = vmatprep.subr.mxu0 0.0
    %464 = vmatpush1.msra.mxu0 0.0
    %465 = vmatprep.subr.mxu0 0.0
    %466 = vmatpush1.msra.mxu0 0.0
    %467 = vmatprep.subr.mxu0 0.0
    %468 = vmatpush1.msra.mxu0 0.0
    %469 = vmatprep.subr.mxu0 0.0
    %470 = vmatpush1.msra.mxu0 0.0
    %471 = vmatprep.subr.mxu0 0.0
    %472 = vmatpush1.msra.mxu0 0.0
    %473 = vmatprep.subr.mxu0 0.0
    %474 = vmatpush1.msra.mxu0 0.0
    %475 = vmatprep.subr.mxu0 0.0
    %476 = vmatpush1.msra.mxu0 0.0
    %477 = vmatprep.subr.mxu0 0.0
    %478 = vmatpush1.msra.mxu0 0.0
    %479 = vmatprep.subr.mxu0 0.0
    %480 = vmatpush1.msra.mxu0 0.0
    %481 = vmatprep.subr.mxu0 0.0
    %482 = vmatpush1.msra.mxu0 0.0
    %483 = vmatprep.subr.mxu0 0.0
    %484 = vmatpush1.msra.mxu0 0.0
    %485 = vmatprep.subr.mxu0 0.0
    %486 = vmatpush1.msra.mxu0 0.0
    %487 = vmatprep.subr.mxu0 0.0
    %488 = vmatpush1.msra.mxu0 0.0
    %489 = vmatprep.subr.mxu0 0.0
    %490 = vmatpush1.msra.mxu0 0.0
    %491 = vmatprep.subr.mxu0 0.0
    %492 = vmatpush1.msra.mxu0 0.0
    %493 = vmatprep.subr.mxu0 0.0
    %494 = vmatpush1.msra.mxu0 0.0
    %495 = vmatprep.mubr.f32.mxu0 0.0
    %496 = vmatmul.mubr.f32.gmra.mrb[0].mxu0 %v384
    %v497 = vpop.f32.mrb[0].mxu0
    %v498 = vadd.f32 %v366, %v497
    %v499 = vpop.f32.mrb[0].mxu0
    %500 = vmatprep.mubr.f32.mxu0 0.0
    %501 = vmatmul.mubr.f32.gmra.mrb[0].mxu0 %v387
    %v502 = vpop.f32.mrb[0].mxu0
    %v503 = vadd.f32 %v367, %v502
    %v504 = vpop.f32.mrb[0].mxu0
    %505 = vmatprep.mubr.f32.mxu0 0.0
    %506 = vmatmul.mubr.f32.gmra.mrb[0].mxu0 %v390
    %v507 = vpop.f32.mrb[0].mxu0
    %v508 = vadd.f32 %v368, %v507
    %v509 = vpop.f32.mrb[0].mxu0
    %510 = vmatprep.mubr.f32.mxu0 0.0
    %511 = vmatmul.mubr.f32.gmra.mrb[0].mxu0 %v393
    %v512 = vpop.f32.mrb[0].mxu0
    %v513 = vadd.f32 %v369, %v512
    %v514 = vpop.f32.mrb[0].mxu0
    %515 = vmatprep.mubr.f32.mxu0 0.0
    %516 = vmatmul.mubr.f32.gmra.mrb[0].mxu0 %v396
    %v517 = vpop.f32.mrb[0].mxu0
    %v518 = vadd.f32 %v370, %v517
    %v519 = vpop.f32.mrb[0].mxu0
    %520 = vmatprep.mubr.f32.mxu0 0.0
    %521 = vmatmul.mubr.f32.gmra.mrb[0].mxu0 %v399
    %v522 = vpop.f32.mrb[0].mxu0
    %v523 = vadd.f32 %v371, %v522
    %v524 = vpop.f32.mrb[0].mxu0
    %525 = vmatprep.mubr.f32.mxu0 0.0
    %526 = vmatmul.mubr.f32.gmra.mrb[0].mxu0 %v402
    %v527 = vpop.f32.mrb[0].mxu0
    %v528 = vadd.f32 %v372, %v527
    %v529 = vpop.f32.mrb[0].mxu0
    %530 = vmatprep.mubr.f32.mxu0 0.0
    %531 = vmatmul.mubr.f32.gmra.mrb[0].mxu0 %v405
    %v532 = vpop.f32.mrb[0].mxu0
    %v533 = vadd.f32 %v373, %v532
    %v534 = vpop.f32.mrb[0].mxu0
    %535 = vmatprep.mubr.f32.mxu0 0.0
    %536 = vmatmul.mubr.f32.gmra.mrb[0].mxu0 %v408
    %v537 = vpop.f32.mrb[0].mxu0
    %v538 = vadd.f32 %v374, %v537
    %v539 = vpop.f32.mrb[0].mxu0
    %540 = vmatprep.mubr.f32.mxu0 0.0
    %541 = vmatmul.mubr.f32.gmra.mrb[0].mxu0 %v411
    %v542 = vpop.f32.mrb[0].mxu0
    %v543 = vadd.f32 %v375, %v542
    %v544 = vpop.f32.mrb[0].mxu0
    %545 = vmatprep.mubr.f32.mxu0 0.0
    %546 = vmatmul.mubr.f32.gmra.mrb[0].mxu0 %v414
    %v547 = vpop.f32.mrb[0].mxu0
    %v548 = vadd.f32 %v376, %v547
    %v549 = vpop.f32.mrb[0].mxu0
    %550 = vmatprep.mubr.f32.mxu0 0.0
    %551 = vmatmul.mubr.f32.gmra.mrb[0].mxu0 %v417
    %v552 = vpop.f32.mrb[0].mxu0
    %v553 = vadd.f32 %v377, %v552
    %v554 = vpop.f32.mrb[0].mxu0
    %555 = vmatprep.mubr.f32.mxu0 0.0
    %556 = vmatmul.mubr.f32.gmra.mrb[0].mxu0 %v420
    %v557 = vpop.f32.mrb[0].mxu0
    %v558 = vadd.f32 %v378, %v557
    %v559 = vpop.f32.mrb[0].mxu0
    %560 = vmatprep.mubr.f32.mxu0 0.0
    %561 = vmatmul.mubr.f32.gmra.mrb[0].mxu0 %v423
    %v562 = vpop.f32.mrb[0].mxu0
    %v563 = vadd.f32 %v379, %v562
    %v564 = vpop.f32.mrb[0].mxu0
    %565 = vmatprep.mubr.f32.mxu0 0.0
    %566 = vmatmul.mubr.f32.gmra.mrb[0].mxu0 %v426
    %v567 = vpop.f32.mrb[0].mxu0
    %v568 = vadd.f32 %v380, %v567
    %v569 = vpop.f32.mrb[0].mxu0
    %570 = vmatprep.mubr.f32.mxu0 0.0
    %571 = vmatmul.mubr.f32.gmra.mrb[0].mxu0 %v429
    %v572 = vpop.f32.mrb[0].mxu0
    %v573 = vadd.f32 %v381, %v572
    %v574 = vpop.f32.mrb[0].mxu0
    %575 = vdwg.mxu0
    %v576 = vld [vmem:[%s5] sm:$0x1]
    %v578 = vlaneseq
    %v579 = vshrl.u32 %v578, 7
    %v580 = vsub.s32 0, %v579
    %v581 = vrot.slane %v576, %v580
    %v583 = vadd.f32 %v498, %v581
    %v584 = vadd.f32 %v503, %v581
    %v585 = vadd.f32 %v508, %v581
    %v586 = vadd.f32 %v513, %v581
    %v587 = vadd.f32 %v518, %v581
    %v588 = vadd.f32 %v523, %v581
    %v589 = vadd.f32 %v528, %v581
    %v590 = vadd.f32 %v533, %v581
    %v591 = vadd.f32 %v538, %v581
    %v592 = vadd.f32 %v543, %v581
    %v593 = vadd.f32 %v548, %v581
    %v594 = vadd.f32 %v553, %v581
    %v595 = vadd.f32 %v558, %v581
    %v596 = vadd.f32 %v563, %v581
    %v597 = vadd.f32 %v568, %v581
    %v598 = vadd.f32 %v573, %v581
    %v599 = vmax.f32 %v583, 0.0
    %v600 = vmax.f32 %v584, 0.0
    %v601 = vmax.f32 %v585, 0.0
    %v602 = vmax.f32 %v586, 0.0
    %v603 = vmax.f32 %v587, 0.0
    %v604 = vmax.f32 %v588, 0.0
    %v605 = vmax.f32 %v589, 0.0
    %v606 = vmax.f32 %v590, 0.0
    %v607 = vmax.f32 %v591, 0.0
    %v608 = vmax.f32 %v592, 0.0
    %v609 = vmax.f32 %v593, 0.0
    %v610 = vmax.f32 %v594, 0.0
    %v611 = vmax.f32 %v595, 0.0
    %v612 = vmax.f32 %v596, 0.0
    %v613 = vmax.f32 %v597, 0.0
    %v614 = vmax.f32 %v598, 0.0
    %v615 = vld [vmem:[%s6] sm:$0x1]
    %v617 = vlaneseq
    %v618 = vshrl.u32 %v617, 7
    %v619 = vsub.s32 0, %v618
    %v620 = vrot.slane %v615, %v619
    %v622 = vmul.f32 %v599, %v620
    %v623 = vmul.f32 %v600, %v620
    %v624 = vmul.f32 %v601, %v620
    %v625 = vmul.f32 %v602, %v620
    %v626 = vmul.f32 %v603, %v620
    %v627 = vmul.f32 %v604, %v620
    %v628 = vmul.f32 %v605, %v620
    %v629 = vmul.f32 %v606, %v620
    %v630 = vmul.f32 %v607, %v620
    %v631 = vmul.f32 %v608, %v620
    %v632 = vmul.f32 %v609, %v620
    %v633 = vmul.f32 %v610, %v620
    %v634 = vmul.f32 %v611, %v620
    %v635 = vmul.f32 %v612, %v620
    %v636 = vmul.f32 %v613, %v620
    %v637 = vmul.f32 %v614, %v620
    %v638 = vsel %vm382, %v622, 0.0
    %639 = vadd.xlane.f32.xlu0 %v638
    %v640 = vpop.xlane.xlu0 %639
    %v641 = vsel %vm382, %v623, 0.0
    %642 = vadd.xlane.f32.xlu0 %v641
    %v643 = vpop.xlane.xlu0 %642
    %v644 = vsel %vm382, %v624, 0.0
    %645 = vadd.xlane.f32.xlu0 %v644
    %v646 = vpop.xlane.xlu0 %645
    %v647 = vsel %vm382, %v625, 0.0
    %648 = vadd.xlane.f32.xlu0 %v647
    %v649 = vpop.xlane.xlu0 %648
    %v650 = vsel %vm382, %v626, 0.0
    %651 = vadd.xlane.f32.xlu0 %v650
    %v652 = vpop.xlane.xlu0 %651
    %v653 = vsel %vm382, %v627, 0.0
    %654 = vadd.xlane.f32.xlu0 %v653
    %v655 = vpop.xlane.xlu0 %654
    %v656 = vsel %vm382, %v628, 0.0
    %657 = vadd.xlane.f32.xlu0 %v656
    %v658 = vpop.xlane.xlu0 %657
    %v659 = vsel %vm382, %v629, 0.0
    %660 = vadd.xlane.f32.xlu0 %v659
    %v661 = vpop.xlane.xlu0 %660
    %v662 = vsel %vm382, %v630, 0.0
    %663 = vadd.xlane.f32.xlu0 %v662
    %v664 = vpop.xlane.xlu0 %663
    %v665 = vsel %vm382, %v631, 0.0
    %666 = vadd.xlane.f32.xlu0 %v665
    %v667 = vpop.xlane.xlu0 %666
    %v668 = vsel %vm382, %v632, 0.0
    %669 = vadd.xlane.f32.xlu0 %v668
    %v670 = vpop.xlane.xlu0 %669
    %v671 = vsel %vm382, %v633, 0.0
    %672 = vadd.xlane.f32.xlu0 %v671
    %v673 = vpop.xlane.xlu0 %672
    %v674 = vsel %vm382, %v634, 0.0
    %675 = vadd.xlane.f32.xlu0 %v674
    %v676 = vpop.xlane.xlu0 %675
    %v677 = vsel %vm382, %v635, 0.0
    %678 = vadd.xlane.f32.xlu0 %v677
    %v679 = vpop.xlane.xlu0 %678
    %v680 = vsel %vm382, %v636, 0.0
    %681 = vadd.xlane.f32.xlu0 %v680
    %v682 = vpop.xlane.xlu0 %681
    %v683 = vsel %vm382, %v637, 0.0
    %684 = vadd.xlane.f32.xlu0 %v683
    %v685 = vpop.xlane.xlu0 %684
    %v686 = vld [vmem:[#allocation2] sm:$0x1]
    %688 = vset.pattern.permute.xlu0 0
    %689 = vperm.xlu0 %688, %v686
    %v690 = vpop.permute.xlu0 %689
    %v692 = vlaneseq
    %v693 = vshrl.u32 %v692, 7
    %v694 = vsub.s32 0, %v693
    %v695 = vrot.slane %v690, %v694
    %v696 = vadd.f32 %v640, %v695
    %v697 = vadd.f32 %v643, %v695
    %v698 = vadd.f32 %v646, %v695
    %v699 = vadd.f32 %v649, %v695
    %v700 = vadd.f32 %v652, %v695
    %v701 = vadd.f32 %v655, %v695
    %v702 = vadd.f32 %v658, %v695
    %v703 = vadd.f32 %v661, %v695
    %v704 = vadd.f32 %v664, %v695
    %v705 = vadd.f32 %v667, %v695
    %v706 = vadd.f32 %v670, %v695
    %v707 = vadd.f32 %v673, %v695
    %v708 = vadd.f32 %v676, %v695
    %v709 = vadd.f32 %v679, %v695
    %v710 = vadd.f32 %v682, %v695
    %v711 = vadd.f32 %v685, %v695
    %v728 = vlaneseq
    %v729 = vand.u32 %v728, 127
    %v730 = vlaneseq
    %v731 = vshrl.u32 %v730, 7
    %v732 = vsub.s32 %v729, %v731
    %v733 = vrot.slane %v696, %v732
    %v734 = vadd.s32 %v729, 4294967288
    %v735 = vlaneseq
    %v736 = vshrl.u32 %v735, 7
    %v737 = vsub.s32 %v734, %v736
    %v738 = vrot.slane %v697, %v737
    %vm739 = vcmask 130112
    %v740 = vsel %vm739, %v738, %v733
    %v741 = vadd.s32 %v729, 4294967280
    %v742 = vlaneseq
    %v743 = vshrl.u32 %v742, 7
    %v744 = vsub.s32 %v741, %v743
    %v745 = vrot.slane %v698, %v744
    %vm746 = vcmask 195712
    %v747 = vsel %vm746, %v745, %v740
    %v748 = vadd.s32 %v729, 4294967272
    %v749 = vlaneseq
    %v750 = vshrl.u32 %v749, 7
    %v751 = vsub.s32 %v748, %v750
    %v752 = vrot.slane %v699, %v751
    %vm753 = vcmask 261312
    %v754 = vsel %vm753, %v752, %v747
    %v755 = vadd.s32 %v729, 4294967264
    %v756 = vlaneseq
    %v757 = vshrl.u32 %v756, 7
    %v758 = vsub.s32 %v755, %v757
    %v759 = vrot.slane %v700, %v758
    %vm760 = vcmask 326912
    %v761 = vsel %vm760, %v759, %v754
    %v762 = vadd.s32 %v729, 4294967256
    %v763 = vlaneseq
    %v764 = vshrl.u32 %v763, 7
    %v765 = vsub.s32 %v762, %v764
    %v766 = vrot.slane %v701, %v765
    %vm767 = vcmask 392512
    %v768 = vsel %vm767, %v766, %v761
    %v769 = vadd.s32 %v729, 4294967248
    %v770 = vlaneseq
    %v771 = vshrl.u32 %v770, 7
    %v772 = vsub.s32 %v769, %v771
    %v773 = vrot.slane %v702, %v772
    %vm774 = vcmask 458112
    %v775 = vsel %vm774, %v773, %v768
    %v776 = vadd.s32 %v729, 4294967240
    %v777 = vlaneseq
    %v778 = vshrl.u32 %v777, 7
    %v779 = vsub.s32 %v776, %v778
    %v780 = vrot.slane %v703, %v779
    %vm781 = vcmask 523712
    %v782 = vsel %vm781, %v780, %v775
    %v783 = vadd.s32 %v729, 4294967232
    %v784 = vlaneseq
    %v785 = vshrl.u32 %v784, 7
    %v786 = vsub.s32 %v783, %v785
    %v787 = vrot.slane %v704, %v786
    %vm788 = vcmask 589312
    %v789 = vsel %vm788, %v787, %v782
    %v790 = vadd.s32 %v729, 4294967224
    %v791 = vlaneseq
    %v792 = vshrl.u32 %v791, 7
    %v793 = vsub.s32 %v790, %v792
    %v794 = vrot.slane %v705, %v793
    %vm795 = vcmask 654912
    %v796 = vsel %vm795, %v794, %v789
    %v797 = vadd.s32 %v729, 4294967216
    %v798 = vlaneseq
    %v799 = vshrl.u32 %v798, 7
    %v800 = vsub.s32 %v797, %v799
    %v801 = vrot.slane %v706, %v800
    %vm802 = vcmask 720512
    %v803 = vsel %vm802, %v801, %v796
    %v804 = vadd.s32 %v729, 4294967208
    %v805 = vlaneseq
    %v806 = vshrl.u32 %v805, 7
    %v807 = vsub.s32 %v804, %v806
    %v808 = vrot.slane %v707, %v807
    %vm809 = vcmask 786112
    %v810 = vsel %vm809, %v808, %v803
    %v811 = vadd.s32 %v729, 4294967200
    %v812 = vlaneseq
    %v813 = vshrl.u32 %v812, 7
    %v814 = vsub.s32 %v811, %v813
    %v815 = vrot.slane %v708, %v814
    %vm816 = vcmask 851712
    %v817 = vsel %vm816, %v815, %v810
    %v818 = vadd.s32 %v729, 4294967192
    %v819 = vlaneseq
    %v820 = vshrl.u32 %v819, 7
    %v821 = vsub.s32 %v818, %v820
    %v822 = vrot.slane %v709, %v821
    %vm823 = vcmask 917312
    %v824 = vsel %vm823, %v822, %v817
    %v825 = vadd.s32 %v729, 4294967184
    %v826 = vlaneseq
    %v827 = vshrl.u32 %v826, 7
    %v828 = vsub.s32 %v825, %v827
    %v829 = vrot.slane %v710, %v828
    %vm830 = vcmask 982912
    %v831 = vsel %vm830, %v829, %v824
    %v832 = vadd.s32 %v729, 4294967176
    %v833 = vlaneseq
    %v834 = vshrl.u32 %v833, 7
    %v835 = vsub.s32 %v832, %v834
    %v836 = vrot.slane %v711, %v835
    %vm837 = vcmask 1048512
    %v838 = vsel %vm837, %v836, %v831
    %840 = vst [vmem:[#allocation3] sm:$0x1] %v838
    // Predicated region
    $region34: #{tpu_custom_call.1} parent=1 // pred_check
      _
    $region35: #{tpu_custom_call.1} parent=1 // pred_check_branch
      %842 = sbr.rel (0) target = $region37
    $region36: #{tpu_custom_call.1} parent=1 // pred_region
      %s844 = ssub.s32 16, 16
      %845 = vsyncadd [#allocation4], %s844
      %s847 = sshll.u32 [#allocation3], 4
      %s848 = int_to_ptr.vmem [resolvable:$true] %s847
      %850 = dma.vmem_to_hbm [thread:$0]  %s848, 16, %s8, [#allocation4]
    $region37: #{tpu_custom_call.1} parent=1 // pred_fallthru
      _
    // Predicated region
    $region38: #{tpu_custom_call.1} parent=1 // pred_check
      _
    $region39: #{tpu_custom_call.1} parent=1 // pred_check_branch
      %852 = sbr.rel (0) target = $region41
    $region40: #{tpu_custom_call.1} parent=1 // pred_region
      %853 = dma.done [#allocation4], 16
    $region41: #{tpu_custom_call.1} parent=1 // pred_fallthru
      _
    %854 = vsyncpa [#allocation4], 1

</llo_original>
